<compile_context>
chip_gen: v5e
topology: v5e:2x2
jax: 0.10.0
libtpu: 0.0.40
codegen_flags: <defaults>
</compile_context>

<pallas_src>
import math

import jax
import jax.numpy as jnp
from jax.experimental import pallas as pl
from jax.experimental.pallas import tpu as pltpu

EPS = 1e-5  # PyTorch nn.LayerNorm default eps

_VMEM_LIMIT = 32 * 1024 * 1024   # fits physical VMEM on v5e/v6e (128 MiB) and v7x (64 MiB)
_VMEM_BUDGET = 12 * 1024 * 1024  # per-step working-set target (leaves headroom under limit)
_TARGET_BLOCK_BYTES = 1 << 20    # ~1 MiB input blocks: >=85% of HBM roofline in measurements


def _round_up(x, m):
    return ((x + m - 1) // m) * m


def _itemsize(dtype):
    return jnp.dtype(dtype).itemsize


def _pick_row_tile(R, D, itemsize):
    """Rows per block, 8-aligned, sized by bytes and capped by the VMEM working-set budget."""
    # double-buffered input + output (itemsize) + ~2 f32 in-kernel temporaries per row
    per_row_ws = D * (4 * itemsize + 8)
    max_rows_ws = max(8, _VMEM_BUDGET // max(1, per_row_ws))
    rows = max(8, _TARGET_BLOCK_BYTES // max(1, D * itemsize))
    rows = min(rows, max_rows_ws)
    rows = _round_up(rows, 8)
    rows = min(rows, _round_up(R, 8))
    return rows


def _pick_seq_tile(N, D, Dout, itemsize, resident_bytes):
    """Seq rows per block for the fused kernel; accounts for VMEM-resident weights/context."""
    per_row_ws = (2 * D + 2 * Dout) * itemsize + (D + Dout) * 4
    avail = max(1, _VMEM_BUDGET - resident_bytes)
    max_rows_ws = max(8, avail // max(1, per_row_ws))
    rows = max(8, _TARGET_BLOCK_BYTES // max(1, D * itemsize))
    rows = min(rows, max_rows_ws)
    rows = _round_up(rows, 8)
    rows = min(rows, _round_up(N, 8))
    return rows


# ---------------------------------------------------------------------------
# Generic row-tiled LayerNorm kernel (used by the generic PreNormPallas path)
# ---------------------------------------------------------------------------

def _ln_rows_kernel(x_ref, w_ref, b_ref, o_ref):
    # x_ref: (TM, D) row tile ; w_ref/b_ref: (1, D)
    x = x_ref[...].astype(jnp.float32)
    w = w_ref[...].astype(jnp.float32)
    b = b_ref[...].astype(jnp.float32)
    mean = jnp.mean(x, axis=-1, keepdims=True)
    xc = x - mean
    var = jnp.mean(xc * xc, axis=-1, keepdims=True)      # biased var (PyTorch LN)
    o_ref[...] = (xc * jax.lax.rsqrt(var + EPS) * w + b).astype(o_ref.dtype)


def layernorm(x, weight, bias):
    """LayerNorm over the last dim. x: (..., D); weight/bias: (D,).

    Leading dims are flattened to rows and tiled in byte-sized, 8-aligned row blocks.
    Ragged last block is handled by Pallas (no pad / slice copies)."""
    orig_shape = x.shape
    D = orig_shape[-1]
    R = math.prod(orig_shape[:-1])
    x2 = x.reshape(R, D)

    TM = _pick_row_tile(R, D, _itemsize(x.dtype))

    out = pl.pallas_call(
        _ln_rows_kernel,
        out_shape=jax.ShapeDtypeStruct((R, D), x.dtype),
        grid=(pl.cdiv(R, TM),),
        in_specs=[
            pl.BlockSpec((TM, D), lambda i: (i, 0)),
            pl.BlockSpec((1, D), lambda i: (0, 0)),
            pl.BlockSpec((1, D), lambda i: (0, 0)),
        ],
        out_specs=pl.BlockSpec((TM, D), lambda i: (i, 0)),
        compiler_params=pltpu.CompilerParams(
            dimension_semantics=("parallel",),
            vmem_limit_bytes=_VMEM_LIMIT),
    )(x2, weight.reshape(1, D), bias.reshape(1, D))

    return out.reshape(orig_shape)


# ---------------------------------------------------------------------------
# Single fused kernel for the example fn:
#     out = LN(x) @ Wx + bx + (mean(LN(context), seq) @ Wc + bc)[:, None, :]
# Context projection is computed once per batch (ti == 0) into a VMEM scratch.
# ---------------------------------------------------------------------------

def _prenorm_cross_kernel(x_ref, nw_ref, nb_ref, wx_ref, bx_ref,
                          ctx_ref, cw_ref, cb_ref, wc_ref, bc_ref,
                          o_ref, cproj_sc):
    ti = pl.program_id(1)

    @pl.when(ti == 0)
    def _():
        # ctx_ref: (1, M, C) — full, exact block (no ragged rows enter this reduction)
        c = ctx_ref[0].astype(jnp.float32)                   # (M, C)
        cw = cw_ref[...].astype(jnp.float32)
        cb = cb_ref[...].astype(jnp.float32)
        cmean = jnp.mean(c, axis=-1, keepdims=True)
        cc = c - cmean
        cvar = jnp.mean(cc * cc, axis=-1, keepdims=True)
        cn = cc * jax.lax.rsqrt(cvar + EPS) * cw + cb        # LN(context)   (M, C)
        cm = jnp.mean(cn, axis=0, keepdims=True)             # mean over seq (1, C)
        proj = jnp.dot(cm.astype(wc_ref.dtype), wc_ref[...],
                       preferred_element_type=jnp.float32)   # (1, Dout) on MXU
        cproj_sc[...] = proj + bc_ref[...].astype(jnp.float32)

    # x_ref: (1, TN, D); ragged rows in the last tile only affect masked output rows.
    x = x_ref[0].astype(jnp.float32)                          # (TN, D)
    w = nw_ref[...].astype(jnp.float32)
    b = nb_ref[...].astype(jnp.float32)
    mean = jnp.mean(x, axis=-1, keepdims=True)
    xc = x - mean
    var = jnp.mean(xc * xc, axis=-1, keepdims=True)
    xn = xc * jax.lax.rsqrt(var + EPS) * w + b                # LN(x)         (TN, D)
    # Cast LN output to the weight dtype: bf16 weights -> native bf16 MXU + f32 accumulate.
    y = jnp.dot(xn.astype(wx_ref.dtype), wx_ref[...],
                preferred_element_type=jnp.float32)           # (TN, Dout)
    y = y + bx_ref[...].astype(jnp.float32) + cproj_sc[...]
    o_ref[0] = y.astype(o_ref.dtype)


def fused_prenorm_cross(x, context, norm_w, norm_b, ctx_w, ctx_b, Wx, bx, Wc, bc):
    """Fused PreNorm + example fn in a SINGLE pallas_call."""
    B, N, D = x.shape
    _, M, C = context.shape
    Dout = Wx.shape[1]
    itemsize = _itemsize(x.dtype)

    # VMEM-resident operands that stay fixed across the grid (weights + per-batch context)
    resident = (D * Dout * _itemsize(Wx.dtype)      # Wx
                + C * Dout * _itemsize(Wc.dtype)    # Wc
                + 2 * M * C * _itemsize(context.dtype)  # context block (double-buffered)
                + 2 * (D + C + 2 * Dout) * 4)       # LN params, biases, cproj scratch
    TN = _pick_seq_tile(N, D, Dout, itemsize, resident)

    out = pl.pallas_call(
        _prenorm_cross_kernel,
        out_shape=jax.ShapeDtypeStruct((B, N, Dout), x.dtype),
        grid=(B, pl.cdiv(N, TN)),
        in_specs=[
            pl.BlockSpec((1, TN, D), lambda bi, ti: (bi, ti, 0)),   # x tile
            pl.BlockSpec((1, D), lambda bi, ti: (0, 0)),            # norm_w
            pl.BlockSpec((1, D), lambda bi, ti: (0, 0)),            # norm_b
            pl.BlockSpec((D, Dout), lambda bi, ti: (0, 0)),         # Wx (VMEM resident)
            pl.BlockSpec((1, Dout), lambda bi, ti: (0, 0)),         # bx
            pl.BlockSpec((1, M, C), lambda bi, ti: (bi, 0, 0)),     # context (same block across ti)
            pl.BlockSpec((1, C), lambda bi, ti: (0, 0)),            # ctx_w
            pl.BlockSpec((1, C), lambda bi, ti: (0, 0)),            # ctx_b
            pl.BlockSpec((C, Dout), lambda bi, ti: (0, 0)),         # Wc
            pl.BlockSpec((1, Dout), lambda bi, ti: (0, 0)),         # bc
        ],
        out_specs=pl.BlockSpec((1, TN, Dout), lambda bi, ti: (bi, ti, 0)),
        scratch_shapes=[pltpu.VMEM((1, Dout), jnp.float32)],        # per-batch c_proj
        compiler_params=pltpu.CompilerParams(
            # batch "parallel" (v7x dual-TC sharding); seq tiles "arbitrary"
            # because the c_proj scratch is carried across them.
            dimension_semantics=("parallel", "arbitrary"),
            vmem_limit_bytes=_VMEM_LIMIT),
    )(x, norm_w.reshape(1, D), norm_b.reshape(1, D), Wx, bx.reshape(1, Dout),
      context, ctx_w.reshape(1, C), ctx_b.reshape(1, C), Wc, bc.reshape(1, Dout))

    return out
    # TODO(synk): D/C/Dout = 32/16/32 leave the 128-lane axis <=25% occupied (masked
    # vst.msk stores, mostly-empty MXU passes); padding the model feature dims to 128 is a
    # model-layout decision, not done silently here.  For very large D/Dout, tile K (and
    # Dout) on the grid with an f32 accumulator instead of whole-operand Wx blocks, and
    # tile M for very long contexts (v7x 64 MiB VMEM).


# ---------------------------------------------------------------------------
# PreNorm modules
# ---------------------------------------------------------------------------

class PreNormPallas:
    """Mirrors PyTorch PreNorm: x = LN(x); optionally kwargs['context'] = LN_ctx(context);
    return fn(x, **kwargs). Generic path — fn is arbitrary user code; only the LayerNorms
    run as Pallas kernels here."""

    def __init__(self, dim, fn, context_dim=None, key=None):
        if key is None:
            key = jax.random.PRNGKey(0)
        k1, k2, k3, k4 = jax.random.split(key, 4)
        self.fn = fn
        self.norm_w = 1.0 + 0.01 * jax.random.normal(k1, (dim,), jnp.float32)
        self.norm_b = 0.01 * jax.random.normal(k2, (dim,), jnp.float32)
        if context_dim is not None:
            self.ctx_w = 1.0 + 0.01 * jax.random.normal(k3, (context_dim,), jnp.float32)
            self.ctx_b = 0.01 * jax.random.normal(k4, (context_dim,), jnp.float32)
        else:
            self.ctx_w = None
            self.ctx_b = None

    def __call__(self, x, **kwargs):
        x = layernorm(x, self.norm_w, self.norm_b)
        if self.ctx_w is not None:
            context = kwargs['context']
            kwargs = dict(kwargs, context=layernorm(context, self.ctx_w, self.ctx_b))
        return self.fn(x, **kwargs)


class PreNormCrossFused:
    """Fused fast path for PreNorm wrapping the example fn:
    fn(x, context) = x @ Wx + bx + (mean(context, 1) @ Wc + bc)[:, None, :]."""

    def __init__(self, norm_w, norm_b, ctx_w, ctx_b, Wx, bx, Wc, bc):
        self.norm_w, self.norm_b = norm_w, norm_b
        self.ctx_w, self.ctx_b = ctx_w, ctx_b
        self.Wx, self.bx, self.Wc, self.bc = Wx, bx, Wc, bc

    def __call__(self, x, context):
        return fused_prenorm_cross(x, context,
                                   self.norm_w, self.norm_b,
                                   self.ctx_w, self.ctx_b,
                                   self.Wx, self.bx, self.Wc, self.bc)


# ---------------------------------------------------------------------------
# Pure-JAX reference for sanity checking
# ---------------------------------------------------------------------------

def _ln_ref(x, w, b):
    mean = jnp.mean(x, axis=-1, keepdims=True)
    var = jnp.mean((x - mean) ** 2, axis=-1, keepdims=True)
    return (x - mean) * jax.lax.rsqrt(var + EPS) * w + b


if __name__ == "__main__":
    key = jax.random.PRNGKey(0)
    kx, kc, kp, kf1, kf2 = jax.random.split(key, 5)

    B, N, D = 2, 8, 32          # x: (batch, seq, dim)
    M, C = 8, 16                # context: (batch, ctx_seq, context_dim)

    x = jax.random.normal(kx, (B, N, D), jnp.float32)
    context = jax.random.normal(kc, (B, M, C), jnp.float32)

    # fn weights (deterministic, synthetic)
    Wx = 0.02 * jax.random.normal(kf1, (D, D), jnp.float32)
    bx = jnp.zeros((D,), jnp.float32)
    Wc = 0.02 * jax.random.normal(kf2, (C, D), jnp.float32)
    bc = jnp.zeros((D,), jnp.float32)

    # ---- generic PreNorm path (LN kernels + plain-JAX user fn) ----
    def example_fn(x_n, context):
        c_proj = jnp.mean(context, axis=1) @ Wc + bc           # (B, D)
        return jnp.einsum('bnd,de->bne', x_n, Wx) + bx + c_proj[:, None, :]

    module = PreNormPallas(dim=D, fn=example_fn, context_dim=C, key=kp)
    out_generic = module(x, context=context)

    # ---- fused path: LN(x) + LN(ctx) + matmuls + broadcast-add in ONE pallas_call ----
    fused = PreNormCrossFused(module.norm_w, module.norm_b,
                              module.ctx_w, module.ctx_b, Wx, bx, Wc, bc)
    out_fused = fused(x, context)

    out_generic, out_fused = jax.block_until_ready((out_generic, out_fused))

    # ---- pure-JAX reference of the same forward pass ----
    x_n = _ln_ref(x, module.norm_w, module.norm_b)
    c_n = _ln_ref(context, module.ctx_w, module.ctx_b)
    ref = jnp.einsum('bnd,de->bne', x_n, Wx) + bx \
        + (jnp.mean(c_n, axis=1) @ Wc + bc)[:, None, :]

    assert out_generic.shape == (B, N, D)
    assert out_fused.shape == (B, N, D)
    assert jnp.allclose(out_generic, ref, atol=1e-4, rtol=1e-4), "generic path mismatch"
    assert jnp.allclose(out_fused, ref, atol=1e-4, rtol=1e-4), "fused path mismatch"
    print("KERNEL_OK")
</pallas_src>

<mosaic_0001>
module attributes {stable_mosaic.version = 11 : i64} {
  func.func @_ln_rows_kernel(%arg0: i32, %arg1: memref<16x32xf32, #tpu.memory_space<vmem>>, %arg2: memref<1x32xf32, #tpu.memory_space<vmem>>, %arg3: memref<1x32xf32, #tpu.memory_space<vmem>>, %arg4: memref<16x32xf32, #tpu.memory_space<vmem>>) attributes {dimension_semantics = [#tpu.dimension_semantics<parallel>], iteration_bounds = array<i64: 1>, scalar_prefetch = 0 : i64, scratch_operands = 0 : i64, tpu.core_type = #tpu.core_type<tc>, window_params = [{transform_indices = @transform_0, window_bounds = array<i64: 16, 32>}, {pipeline_mode = #tpu.pipeline_mode<synchronous>, transform_indices = @transform_1, window_bounds = array<i64: 1, 32>}, {pipeline_mode = #tpu.pipeline_mode<synchronous>, transform_indices = @transform_2, window_bounds = array<i64: 1, 32>}, {transform_indices = @transform_3, window_bounds = array<i64: 16, 32>}]} {
    %c0 = arith.constant 0 : index
    %c0_0 = arith.constant 0 : index
    %0 = vector.load %arg1[%c0, %c0_0] : memref<16x32xf32, #tpu.memory_space<vmem>>, vector<16x32xf32>
    %c0_1 = arith.constant 0 : index
    %c0_2 = arith.constant 0 : index
    %1 = vector.load %arg2[%c0_1, %c0_2] : memref<1x32xf32, #tpu.memory_space<vmem>>, vector<1x32xf32>
    %c0_3 = arith.constant 0 : index
    %c0_4 = arith.constant 0 : index
    %2 = vector.load %arg3[%c0_3, %c0_4] : memref<1x32xf32, #tpu.memory_space<vmem>>, vector<1x32xf32>
    %cst = arith.constant dense<0.000000e+00> : vector<16xf32>
    %3 = vector.multi_reduction <add>, %0, %cst [1] : vector<16x32xf32> to vector<16xf32>
    %4 = vector.shape_cast %3 : vector<16xf32> to vector<16x1xf32>
    %cst_5 = arith.constant 3.200000e+01 : f32
    %5 = vector.broadcast %cst_5 : f32 to vector<16x1xf32>
    %6 = arith.divf %4, %5 : vector<16x1xf32>
    %7 = vector.broadcast %6 : vector<16x1xf32> to vector<16x32xf32>
    %8 = arith.subf %0, %7 : vector<16x32xf32>
    %9 = arith.mulf %8, %8 : vector<16x32xf32>
    %cst_6 = arith.constant dense<0.000000e+00> : vector<16xf32>
    %10 = vector.multi_reduction <add>, %9, %cst_6 [1] : vector<16x32xf32> to vector<16xf32>
    %11 = vector.shape_cast %10 : vector<16xf32> to vector<16x1xf32>
    %cst_7 = arith.constant 3.200000e+01 : f32
    %12 = vector.broadcast %cst_7 : f32 to vector<16x1xf32>
    %13 = arith.divf %11, %12 : vector<16x1xf32>
    %cst_8 = arith.constant 9.99999974E-6 : f32
    %14 = vector.broadcast %cst_8 : f32 to vector<16x1xf32>
    %15 = arith.addf %13, %14 : vector<16x1xf32>
    %16 = math.rsqrt %15 : vector<16x1xf32>
    %17 = vector.broadcast %16 : vector<16x1xf32> to vector<16x32xf32>
    %18 = arith.mulf %8, %17 : vector<16x32xf32>
    %19 = vector.broadcast %1 : vector<1x32xf32> to vector<16x32xf32>
    %20 = arith.mulf %18, %19 : vector<16x32xf32>
    %21 = vector.broadcast %2 : vector<1x32xf32> to vector<16x32xf32>
    %22 = arith.addf %20, %21 : vector<16x32xf32>
    %c0_9 = arith.constant 0 : index
    %c0_10 = arith.constant 0 : index
    %23 = vector.load %arg4[%c0_9, %c0_10] : memref<16x32xf32, #tpu.memory_space<vmem>>, vector<16x32xf32>
    tpu.vector_store %arg4[%c0_9, %c0_10], %22 {strides = array<i32>} : memref<16x32xf32, #tpu.memory_space<vmem>>, vector<16x32xf32>,
    return
  }
  func.func @transform_0(%arg0: i32) -> (i32, i32) {
    %c0_i32 = arith.constant 0 : i32
    %c0_i32_0 = arith.constant 0 : i32
    return %arg0, %c0_i32 : i32, i32
  }
  func.func @transform_1(%arg0: i32) -> (i32, i32) {
    %c0_i32 = arith.constant 0 : i32
    %c0_i32_0 = arith.constant 0 : i32
    %c0_i32_1 = arith.constant 0 : i32
    return %c0_i32, %c0_i32_0 : i32, i32
  }
  func.func @transform_2(%arg0: i32) -> (i32, i32) {
    %c0_i32 = arith.constant 0 : i32
    %c0_i32_0 = arith.constant 0 : i32
    %c0_i32_1 = arith.constant 0 : i32
    return %c0_i32, %c0_i32_0 : i32, i32
  }
  func.func @transform_3(%arg0: i32) -> (i32, i32) {
    %c0_i32 = arith.constant 0 : i32
    %c0_i32_0 = arith.constant 0 : i32
    return %arg0, %c0_i32 : i32, i32
  }
}

</mosaic_0001>

<llo_original>
// kernel: tpu_custom_call.1
$region0: #{tpu_custom_call.1}
  #allocation0 [shape = 'u32[]', space=smem, size = 0x4, offset = 0x4, fixed_abs, tag = 'smem constant byte address 0x4 - core index']
  #allocation1 [shape = 'u32[72,128]{1,0:T(1,128)}', space=vmem, size = 0x9000, scoped, tag = 'internal scratch']
  %s0 = inlined_call_operand.hbm [shape: f32[16,32], index: 0, kind: input, shape index: {}]
  %s1 = inlined_call_operand.hbm [shape: f32[1,32], index: 1, kind: input, shape index: {}]
  %s2 = inlined_call_operand.vmem [shape: f32[1,32], index: 2, kind: input, shape index: {}]
  %s3 = inlined_call_operand.hbm [shape: f32[16,32], index: 3, kind: output, shape index: {}]
  %s4 = sld [smem:[#allocation0]]
  $region30: #{tpu_custom_call.1} parent=0
    _
  %s6 = ssub.s32 1, %s4
  %s7 = scalar_select 0, %s6, %s4
  $region1: #{tpu_custom_call.1} parent=0
    #allocation2 [shape = 'u8[8192]{0}', space=vmem, size = 0x2000, scoped, tag = 'input window, operand 0, single buffered']
    #allocation3 [shape = 's32[1]{0}', space=sflag, size = 0x4, scoped, tag = 'scoped memory for tpu_custom_call.1']
    #allocation4 [shape = 's32[1]{0}', space=sflag, size = 0x4, scoped, tag = 'scoped memory for tpu_custom_call.1']
    #allocation5 [shape = 'u8[512]{0}', space=vmem, size = 0x400, scoped, tag = 'input window, operand 1, single buffered']
    #allocation6 [shape = 's32[1]{0}', space=sflag, size = 0x4, scoped, tag = 'scoped memory for tpu_custom_call.1']
    #allocation7 [shape = 'u8[8192]{0}', space=vmem, size = 0x2000, scoped, tag = 'output window, operand 0, single buffered']
    %8 = vsyncpa [#allocation3], 0
    %9 = vsyncpa [#allocation6], 0
    %10 = vsyncpa [#allocation4], 0
    // Predicated region
    $region2: #{tpu_custom_call.1} parent=1 // pred_check
      _
    $region3: #{tpu_custom_call.1} parent=1 // pred_check_branch
      %12 = sbr.rel (0) target = $region5
    $region4: #{tpu_custom_call.1} parent=1 // pred_region
      %14 = vsyncadd [#allocation3], 0
      %s15 = sshll.u32 %s0, 4
      %s16 = int_to_ptr.hbm [resolvable:$true] %s15
      %s17 = sshll.u32 [#allocation2], 4
      %s18 = int_to_ptr.vmem [resolvable:$true] %s17
      %23 = dma.hbm_to_vmem [thread:$0]  %s16, 256, %s18, [#allocation3], 128, 128, 8
    $region5: #{tpu_custom_call.1} parent=1 // pred_fallthru
      _
    // Predicated region
    $region6: #{tpu_custom_call.1} parent=1 // pred_check
      _
    $region7: #{tpu_custom_call.1} parent=1 // pred_check_branch
      %25 = sbr.rel (0) target = $region9
    $region8: #{tpu_custom_call.1} parent=1 // pred_region
      %27 = vsyncadd [#allocation6], 0
      %s29 = sshll.u32 %s1, 4
      %s30 = int_to_ptr.hbm [resolvable:$true] %s29
      %s31 = sshll.u32 [#allocation5], 4
      %s32 = int_to_ptr.vmem [resolvable:$true] %s31
      %34 = dma.hbm_to_vmem [thread:$0]  %s30, 16, %s32, [#allocation6]
    $region9: #{tpu_custom_call.1} parent=1 // pred_fallthru
      _
    // Predicated region
    $region10: #{tpu_custom_call.1} parent=1 // pred_check
      _
    $region11: #{tpu_custom_call.1} parent=1 // pred_check_branch
      %36 = sbr.rel (0) target = $region13
    $region12: #{tpu_custom_call.1} parent=1 // pred_region
      _
    $region13: #{tpu_custom_call.1} parent=1 // pred_fallthru
      _
    // Predicated region
    $region14: #{tpu_custom_call.1} parent=1 // pred_check
      _
    $region15: #{tpu_custom_call.1} parent=1 // pred_check_branch
      %38 = sbr.rel (0) target = $region17
    $region16: #{tpu_custom_call.1} parent=1 // pred_region
      %40 = dma.done [#allocation3], 256
    $region17: #{tpu_custom_call.1} parent=1 // pred_fallthru
      _
    // Predicated region
    $region18: #{tpu_custom_call.1} parent=1 // pred_check
      _
    $region19: #{tpu_custom_call.1} parent=1 // pred_check_branch
      %42 = sbr.rel (0) target = $region21
    $region20: #{tpu_custom_call.1} parent=1 // pred_region
      %44 = dma.done [#allocation6], 16
    $region21: #{tpu_custom_call.1} parent=1 // pred_fallthru
      _
    %v45 = vld [vmem:[#allocation2] sm:$0xff]
    %v46 = vld [vmem:[#allocation2 + $0x8] sm:$0xff]
    %v47 = vld [vmem:[#allocation5] sm:$0x1]
    %v48 = vld [vmem:[%s2] sm:$0x1]
    %vm49 = vcmask 261120
    %v50 = vsel %vm49, %v45, 0.0
    %51 = vadd.xlane.f32.xlu0 %v50
    %v52 = vpop.xlane.xlu0 %51
    %v53 = vsel %vm49, %v46, 0.0
    %54 = vadd.xlane.f32.xlu0 %v53
    %v55 = vpop.xlane.xlu0 %54
    %v56 = vrcp.pop 32.0
    %v57 = vmul.f32 32.0, %v56
    %v58 = vsub.f32 1.0, %v57
    %v59 = vmul.f32 %v56, %v58
    %v60 = vadd.f32 %v56, %v59
    %vm61 = vweird.f32 %v56
    %v62 = vsel %vm61, %v56, %v60
    %v63 = vmul.f32 %v52, %v62
    %v64 = vmul.f32 %v55, %v62
    %v65 = vsub.f32 %v45, %v63
    %v66 = vsub.f32 %v46, %v64
    %v67 = vmul.f32 %v65, %v65
    %v68 = vmul.f32 %v66, %v66
    %v69 = vsel %vm49, %v67, 0.0
    %70 = vadd.xlane.f32.xlu0 %v69
    %v71 = vpop.xlane.xlu0 %70
    %v72 = vsel %vm49, %v68, 0.0
    %73 = vadd.xlane.f32.xlu0 %v72
    %v74 = vpop.xlane.xlu0 %73
    %v75 = vmul.f32 %v71, %v62
    %v76 = vmul.f32 %v74, %v62
    %v77 = vadd.f32 %v75, 1e-05
    %v78 = vadd.f32 %v76, 1e-05
    %v79 = vrsqrt.pop %v77
    %v80 = vmul.f32 %v79, %v77
    %v81 = vmul.f32 %v80, %v79
    %v82 = vmul.f32 0.5, %v81
    %v83 = vsub.f32 1.5, %v82
    %v84 = vmul.f32 %v79, %v83
    %vm85 = vweird.f32 %v77
    %vm86 = vweird.f32 %v79
    %vm87 = vmor %vm85, %vm86
    %v88 = vsel %vm87, %v79, %v84
    %v89 = vrsqrt.pop %v78
    %v90 = vmul.f32 %v89, %v78
    %v91 = vmul.f32 %v90, %v89
    %v92 = vmul.f32 0.5, %v91
    %v93 = vsub.f32 1.5, %v92
    %v94 = vmul.f32 %v89, %v93
    %vm95 = vweird.f32 %v78
    %vm96 = vweird.f32 %v89
    %vm97 = vmor %vm95, %vm96
    %v98 = vsel %vm97, %v89, %v94
    %v99 = vmul.f32 %v65, %v88
    %v100 = vmul.f32 %v66, %v98
    %v102 = vperm.slane %v47, 0
    %v104 = vmul.f32 %v99, %v102
    %v105 = vmul.f32 %v100, %v102
    %v107 = vperm.slane %v48, 0
    %v109 = vadd.f32 %v104, %v107
    %v110 = vadd.f32 %v105, %v107
    %111 = vst.msk [vmem:[#allocation7] sm:$0xff] %vm49, %v109
    %112 = vst.msk [vmem:[#allocation7 + $0x8] sm:$0xff] %vm49, %v110
    // Predicated region
    $region22: #{tpu_custom_call.1} parent=1 // pred_check
      _
    $region23: #{tpu_custom_call.1} parent=1 // pred_check_branch
      %114 = sbr.rel (0) target = $region25
    $region24: #{tpu_custom_call.1} parent=1 // pred_region
      %116 = vsyncadd [#allocation4], 0
      %s117 = sshll.u32 [#allocation7], 4
      %s118 = int_to_ptr.vmem [resolvable:$true] %s117
      %s119 = sshll.u32 %s3, 4
      %s120 = int_to_ptr.hbm [resolvable:$true] %s119
      %125 = dma.vmem_to_hbm [thread:$0]  %s118, 256, %s120, [#allocation4], 128, 128, 8
    $region25: #{tpu_custom_call.1} parent=1 // pred_fallthru
      _
    // Predicated region
    $region26: #{tpu_custom_call.1} parent=1 // pred_check
      _
    $region27: #{tpu_custom_call.1} parent=1 // pred_check_branch
      %127 = sbr.rel (0) target = $region29
    $region28: #{tpu_custom_call.1} parent=1 // pred_region
      %129 = dma.done [#allocation4], 256
    $region29: #{tpu_custom_call.1} parent=1 // pred_fallthru
      _
    %130 = vsyncpa [#allocation3], 1
    %131 = vsyncpa [#allocation6], 1
    %132 = vsyncpa [#allocation4], 1

</llo_original>
